<compile_context>
chip_gen: v6e
topology: v6e:2x2x1
jax: 0.10.0
libtpu: 0.0.40
codegen_flags: <defaults>
</compile_context>

<pallas_src>
import jax
import jax.numpy as jnp
import numpy as np
from jax.experimental import pallas as pl
from jax.experimental.pallas import tpu as pltpu


def _pointer_logits_kernel(x_ref, y_ref, w1_ref, b1_ref, w2_ref, b2_ref, m_ref,
                           l1_ref, l2_ref, yw1_sc, yw2_sc):
    # x_ref:   (BB, TT, D)  self_states tile
    # y_ref:   (BB, D)      q_summ rows for this batch block
    # w*_ref:  (D, D)       Linear weights, already laid out (in, out)
    # b*_ref:  (1, D)       Linear biases
    # m_ref:   (BB, TT)     int32 mask, nonzero == masked (pad) position
    # l*_ref:  (BB, TT)     output logits (start / end)
    # yw*_sc:  (BB, D)      cached projections; persist across the T-tile axis

    # Project q_summ once per batch block (T axis is innermost and "arbitrary").
    @pl.when(pl.program_id(1) == 0)
    def _():
        y = y_ref[...].astype(jnp.float32)
        yw1_sc[...] = (jnp.dot(y, w1_ref[...],
                               preferred_element_type=jnp.float32)
                       + b1_ref[...])
        yw2_sc[...] = (jnp.dot(y, w2_ref[...],
                               preferred_element_type=jnp.float32)
                       + b2_ref[...])

    x = x_ref[...].astype(jnp.float32)                         # (BB, TT, D)
    masked = m_ref[...] != 0                                   # (BB, TT)
    neg_inf = jnp.float32(-jnp.inf)

    # Batched mat-vec: one x load feeds both heads.
    l1 = jnp.sum(x * yw1_sc[...][:, None, :], axis=-1)         # (BB, TT)
    l2 = jnp.sum(x * yw2_sc[...][:, None, :], axis=-1)         # (BB, TT)

    l1_ref[...] = jnp.where(masked, neg_inf, l1).astype(l1_ref.dtype)
    l2_ref[...] = jnp.where(masked, neg_inf, l2).astype(l2_ref.dtype)


def _pick_block(n, target, quantum):
    """Largest divisor of n that is <= target and a multiple of `quantum`
    (TPU (8,128) tiling); falls back to the full extent (always legal)."""
    if n <= target:
        return n
    best = None
    for cand in range(quantum, target + 1, quantum):
        if n % cand == 0:
            best = cand
    return best if best is not None else n


def pointer_net_forward(self_states, p_mask, init_states, q_summ,
                        w_start, b_start, w_end, b_end,
                        dropout=0.0, is_training=False, check_answer=False):
    """PointerNet.forward (eval mode).

    self_states: (B, T, D) float; p_mask: (B, T) bool (True == masked/pad);
    init_states: (B, D) (unused by the returned outputs); q_summ: (B, D);
    w_*: (D, D) PyTorch nn.Linear weight (out, in); b_*: (D,) bias.
    Returns (logits1, logits2, x_check=None).
    """
    if check_answer:
        # TODO(synk): check-answer branch needs StackedBRNN (bi-LSTM); no clean
        # Pallas equivalent implemented.
        raise NotImplementedError("check_answer=True path not implemented")

    del init_states  # only feeds the unused GRUCell / check branch
    B, T, D = self_states.shape

    # Tile sizes: batch several rows per step; tile T to bound VMEM
    # (2 * BB * TT * D * 4 B double-buffered for x — matters on v7x's 64 MiB).
    bb = _pick_block(B, 16, 8)
    tt = _pick_block(T, 512, 128)
    grid = (B // bb, T // tt)

    # Parameters in (in, out) layout so the projection is a plain MXU matmul;
    # biases as lane-dense (1, D) rows; mask as lane-dense (B, T) int32.
    w_start_t = jnp.asarray(w_start, jnp.float32).T
    w_end_t = jnp.asarray(w_end, jnp.float32).T
    b_start_r = jnp.asarray(b_start, jnp.float32).reshape(1, D)
    b_end_r = jnp.asarray(b_end, jnp.float32).reshape(1, D)
    mask_i32 = p_mask.astype(jnp.int32)

    logits1, logits2 = pl.pallas_call(
        _pointer_logits_kernel,
        out_shape=(jax.ShapeDtypeStruct((B, T), jnp.float32),
                   jax.ShapeDtypeStruct((B, T), jnp.float32)),
        grid_spec=pltpu.PrefetchScalarGridSpec(
            num_scalar_prefetch=0,
            grid=grid,
            in_specs=[
                pl.BlockSpec((bb, tt, D), lambda b, t: (b, t, 0)),  # self_states
                pl.BlockSpec((bb, D), lambda b, t: (b, 0)),         # q_summ
                pl.BlockSpec((D, D), lambda b, t: (0, 0)),          # W_start^T
                pl.BlockSpec((1, D), lambda b, t: (0, 0)),          # b_start
                pl.BlockSpec((D, D), lambda b, t: (0, 0)),          # W_end^T
                pl.BlockSpec((1, D), lambda b, t: (0, 0)),          # b_end
                pl.BlockSpec((bb, tt), lambda b, t: (b, t)),        # mask
            ],
            out_specs=[
                pl.BlockSpec((bb, tt), lambda b, t: (b, t)),
                pl.BlockSpec((bb, tt), lambda b, t: (b, t)),
            ],
            scratch_shapes=[pltpu.VMEM((bb, D), jnp.float32),
                            pltpu.VMEM((bb, D), jnp.float32)],
        ),
        compiler_params=pltpu.CompilerParams(
            dimension_semantics=("parallel", "arbitrary"),
            vmem_limit_bytes=48 * 1024 * 1024,
        ),
    )(self_states, q_summ, w_start_t, b_start_r, w_end_t, b_end_r, mask_i32)

    return logits1, logits2, None


def pointer_net_reference(self_states, p_mask, q_summ,
                          w_start, b_start, w_end, b_end):
    """Plain-JAX reference mirroring the PyTorch forward (eval mode)."""
    yw1 = q_summ @ w_start.T + b_start
    l1 = jnp.einsum("bd,btd->bt", yw1, self_states)
    l1 = jnp.where(p_mask, -jnp.inf, l1)
    yw2 = q_summ @ w_end.T + b_end
    l2 = jnp.einsum("bd,btd->bt", yw2, self_states)
    l2 = jnp.where(p_mask, -jnp.inf, l2)
    return l1, l2


if __name__ == "__main__":
    B, T, D = 2, 8, 32
    key = jax.random.PRNGKey(0)
    kx, ky, kw1, kw2 = jax.random.split(key, 4)

    self_states = jax.random.normal(kx, (B, T, D), dtype=jnp.float32)
    q_summ = jax.random.normal(ky, (B, D), dtype=jnp.float32)
    init_states = q_summ  # signature compatibility; unused by outputs

    # p_mask: True = padded position (as in masked_fill_(mask, -inf))
    lengths = jnp.array([6, 5], dtype=jnp.int32)
    p_mask = jnp.arange(T)[None, :] >= lengths[:, None]        # (B, T) bool

    # Deterministic init matching Answer.init_weights():
    # xavier_uniform_ on the square (D, D) Linear weight, bias filled with 0.1.
    bound = float(np.sqrt(6.0 / (D + D)))
    w_start = jax.random.uniform(kw1, (D, D), minval=-bound, maxval=bound,
                                 dtype=jnp.float32)
    w_end = jax.random.uniform(kw2, (D, D), minval=-bound, maxval=bound,
                               dtype=jnp.float32)
    b_start = jnp.full((D,), 0.1, dtype=jnp.float32)
    b_end = jnp.full((D,), 0.1, dtype=jnp.float32)

    logits1, logits2, x_check = pointer_net_forward(
        self_states, p_mask, init_states, q_summ,
        w_start, b_start, w_end, b_end,
        dropout=0.2, is_training=False, check_answer=False)
    logits1, logits2 = jax.block_until_ready((logits1, logits2))

    ref1, ref2 = pointer_net_reference(self_states, p_mask, q_summ,
                                       w_start, b_start, w_end, b_end)
    assert logits1.shape == (B, T) and logits2.shape == (B, T)
    assert x_check is None
    np.testing.assert_allclose(np.asarray(logits1), np.asarray(ref1),
                               rtol=1e-5, atol=1e-5)
    np.testing.assert_allclose(np.asarray(logits2), np.asarray(ref2),
                               rtol=1e-5, atol=1e-5)
    print("KERNEL_OK")
</pallas_src>

<mosaic_0001>
module attributes {stable_mosaic.version = 11 : i64} {
  func.func @_pointer_logits_kernel(%arg0: i32, %arg1: i32, %arg2: memref<2x8x32xf32, #tpu.memory_space<vmem>>, %arg3: memref<2x32xf32, #tpu.memory_space<vmem>>, %arg4: memref<32x32xf32, #tpu.memory_space<vmem>>, %arg5: memref<1x32xf32, #tpu.memory_space<vmem>>, %arg6: memref<32x32xf32, #tpu.memory_space<vmem>>, %arg7: memref<1x32xf32, #tpu.memory_space<vmem>>, %arg8: memref<2x8xi32, #tpu.memory_space<vmem>>, %arg9: memref<2x8xf32, #tpu.memory_space<vmem>>, %arg10: memref<2x8xf32, #tpu.memory_space<vmem>>, %arg11: memref<2x32xf32, #tpu.memory_space<vmem>>, %arg12: memref<2x32xf32, #tpu.memory_space<vmem>>) attributes {dimension_semantics = [#tpu.dimension_semantics<parallel>, #tpu.dimension_semantics<arbitrary>], iteration_bounds = array<i64: 1, 1>, scalar_prefetch = 0 : i64, scratch_operands = 2 : i64, tpu.core_type = #tpu.core_type<tc>, window_params = [{transform_indices = @transform_0, window_bounds = array<i64: 2, 8, 32>}, {transform_indices = @transform_1, window_bounds = array<i64: 2, 32>}, {pipeline_mode = #tpu.pipeline_mode<synchronous>, transform_indices = @transform_2, window_bounds = array<i64: 32, 32>}, {pipeline_mode = #tpu.pipeline_mode<synchronous>, transform_indices = @transform_3, window_bounds = array<i64: 1, 32>}, {pipeline_mode = #tpu.pipeline_mode<synchronous>, transform_indices = @transform_4, window_bounds = array<i64: 32, 32>}, {pipeline_mode = #tpu.pipeline_mode<synchronous>, transform_indices = @transform_5, window_bounds = array<i64: 1, 32>}, {transform_indices = @transform_6, window_bounds = array<i64: 2, 8>}, {transform_indices = @transform_7, window_bounds = array<i64: 2, 8>}, {transform_indices = @transform_8, window_bounds = array<i64: 2, 8>}]} {
    %c0_i32 = arith.constant 0 : i32
    %0 = arith.cmpi eq, %arg1, %c0_i32 : i32
    %1 = arith.extui %0 : i1 to i32
    %c0_i32_0 = arith.constant 0 : i32
    %2 = arith.cmpi ne, %1, %c0_i32_0 : i32
    scf.if %2 {
      %c0_17 = arith.constant 0 : index
      %c0_18 = arith.constant 0 : index
      %23 = vector.load %arg3[%c0_17, %c0_18] : memref<2x32xf32, #tpu.memory_space<vmem>>, vector<2x32xf32>
      %c0_19 = arith.constant 0 : index
      %c0_20 = arith.constant 0 : index
      %24 = vector.load %arg4[%c0_19, %c0_20] : memref<32x32xf32, #tpu.memory_space<vmem>>, vector<32x32xf32>
      %cst_21 = arith.constant dense<0.000000e+00> : vector<2x32xf32>
      %25 = tpu.matmul %23, %24, %cst_21 {dimension_numbers = #tpu.dot_dimension_numbers<[1], [0], [0], [1], [0, 0, 1, 1], [], []>} : vector<2x32xf32>, vector<32x32xf32>, vector<2x32xf32> -> vector<2x32xf32>
      %c0_22 = arith.constant 0 : index
      %c0_23 = arith.constant 0 : index
      %26 = vector.load %arg5[%c0_22, %c0_23] : memref<1x32xf32, #tpu.memory_space<vmem>>, vector<1x32xf32>
      %27 = vector.broadcast %26 : vector<1x32xf32> to vector<2x32xf32>
      %28 = arith.addf %25, %27 : vector<2x32xf32>
      %c0_24 = arith.constant 0 : index
      %c0_25 = arith.constant 0 : index
      %29 = vector.load %arg11[%c0_24, %c0_25] : memref<2x32xf32, #tpu.memory_space<vmem>>, vector<2x32xf32>
      tpu.vector_store %arg11[%c0_24, %c0_25], %28 {strides = array<i32>} : memref<2x32xf32, #tpu.memory_space<vmem>>, vector<2x32xf32>,
      %c0_26 = arith.constant 0 : index
      %c0_27 = arith.constant 0 : index
      %30 = vector.load %arg6[%c0_26, %c0_27] : memref<32x32xf32, #tpu.memory_space<vmem>>, vector<32x32xf32>
      %cst_28 = arith.constant dense<0.000000e+00> : vector<2x32xf32>
      %31 = tpu.matmul %23, %30, %cst_28 {dimension_numbers = #tpu.dot_dimension_numbers<[1], [0], [0], [1], [0, 0, 1, 1], [], []>} : vector<2x32xf32>, vector<32x32xf32>, vector<2x32xf32> -> vector<2x32xf32>
      %c0_29 = arith.constant 0 : index
      %c0_30 = arith.constant 0 : index
      %32 = vector.load %arg7[%c0_29, %c0_30] : memref<1x32xf32, #tpu.memory_space<vmem>>, vector<1x32xf32>
      %33 = vector.broadcast %32 : vector<1x32xf32> to vector<2x32xf32>
      %34 = arith.addf %31, %33 : vector<2x32xf32>
      %c0_31 = arith.constant 0 : index
      %c0_32 = arith.constant 0 : index
      %35 = vector.load %arg12[%c0_31, %c0_32] : memref<2x32xf32, #tpu.memory_space<vmem>>, vector<2x32xf32>
      tpu.vector_store %arg12[%c0_31, %c0_32], %34 {strides = array<i32>} : memref<2x32xf32, #tpu.memory_space<vmem>>, vector<2x32xf32>,
    } else {
    }
    %c0 = arith.constant 0 : index
    %c0_1 = arith.constant 0 : index
    %c0_2 = arith.constant 0 : index
    %3 = vector.load %arg2[%c0, %c0_1, %c0_2] : memref<2x8x32xf32, #tpu.memory_space<vmem>>, vector<2x8x32xf32>
    %c0_3 = arith.constant 0 : index
    %c0_4 = arith.constant 0 : index
    %4 = vector.load %arg8[%c0_3, %c0_4] : memref<2x8xi32, #tpu.memory_space<vmem>>, vector<2x8xi32>
    %c0_i32_5 = arith.constant 0 : i32
    %5 = vector.broadcast %c0_i32_5 : i32 to vector<2x8xi32>
    %6 = arith.cmpi ne, %4, %5 : vector<2x8xi32>
    %c0_6 = arith.constant 0 : index
    %c0_7 = arith.constant 0 : index
    %7 = vector.load %arg11[%c0_6, %c0_7] : memref<2x32xf32, #tpu.memory_space<vmem>>, vector<2x32xf32>
    %8 = vector.shape_cast %7 : vector<2x32xf32> to vector<2x1x32xf32>
    %9 = vector.broadcast %8 : vector<2x1x32xf32> to vector<2x8x32xf32>
    %10 = arith.mulf %3, %9 : vector<2x8x32xf32>
    %cst = arith.constant dense<0.000000e+00> : vector<2x8xf32>
    %11 = vector.multi_reduction <add>, %10, %cst [2] : vector<2x8x32xf32> to vector<2x8xf32>
    %c0_8 = arith.constant 0 : index
    %c0_9 = arith.constant 0 : index
    %12 = vector.load %arg12[%c0_8, %c0_9] : memref<2x32xf32, #tpu.memory_space<vmem>>, vector<2x32xf32>
    %13 = vector.shape_cast %12 : vector<2x32xf32> to vector<2x1x32xf32>
    %14 = vector.broadcast %13 : vector<2x1x32xf32> to vector<2x8x32xf32>
    %15 = arith.mulf %3, %14 : vector<2x8x32xf32>
    %cst_10 = arith.constant dense<0.000000e+00> : vector<2x8xf32>
    %16 = vector.multi_reduction <add>, %15, %cst_10 [2] : vector<2x8x32xf32> to vector<2x8xf32>
    %cst_11 = arith.constant 0xFF800000 : f32
    %17 = vector.broadcast %cst_11 : f32 to vector<2x8xf32>
    %18 = arith.select %6, %17, %11 : vector<2x8xi1>, vector<2x8xf32>
    %c0_12 = arith.constant 0 : index
    %c0_13 = arith.constant 0 : index
    %19 = vector.load %arg9[%c0_12, %c0_13] : memref<2x8xf32, #tpu.memory_space<vmem>>, vector<2x8xf32>
    tpu.vector_store %arg9[%c0_12, %c0_13], %18 {strides = array<i32>} : memref<2x8xf32, #tpu.memory_space<vmem>>, vector<2x8xf32>,
    %cst_14 = arith.constant 0xFF800000 : f32
    %20 = vector.broadcast %cst_14 : f32 to vector<2x8xf32>
    %21 = arith.select %6, %20, %16 : vector<2x8xi1>, vector<2x8xf32>
    %c0_15 = arith.constant 0 : index
    %c0_16 = arith.constant 0 : index
    %22 = vector.load %arg10[%c0_15, %c0_16] : memref<2x8xf32, #tpu.memory_space<vmem>>, vector<2x8xf32>
    tpu.vector_store %arg10[%c0_15, %c0_16], %21 {strides = array<i32>} : memref<2x8xf32, #tpu.memory_space<vmem>>, vector<2x8xf32>,
    return
  }
  func.func @transform_0(%arg0: i32, %arg1: i32) -> (i32, i32, i32) {
    %c0_i32 = arith.constant 0 : i32
    %c0_i32_0 = arith.constant 0 : i32
    return %arg0, %arg1, %c0_i32 : i32, i32, i32
  }
  func.func @transform_1(%arg0: i32, %arg1: i32) -> (i32, i32) {
    %c0_i32 = arith.constant 0 : i32
    %c0_i32_0 = arith.constant 0 : i32
    return %arg0, %c0_i32 : i32, i32
  }
  func.func @transform_2(%arg0: i32, %arg1: i32) -> (i32, i32) {
    %c0_i32 = arith.constant 0 : i32
    %c0_i32_0 = arith.constant 0 : i32
    %c0_i32_1 = arith.constant 0 : i32
    return %c0_i32, %c0_i32_0 : i32, i32
  }
  func.func @transform_3(%arg0: i32, %arg1: i32) -> (i32, i32) {
    %c0_i32 = arith.constant 0 : i32
    %c0_i32_0 = arith.constant 0 : i32
    %c0_i32_1 = arith.constant 0 : i32
    return %c0_i32, %c0_i32_0 : i32, i32
  }
  func.func @transform_4(%arg0: i32, %arg1: i32) -> (i32, i32) {
    %c0_i32 = arith.constant 0 : i32
    %c0_i32_0 = arith.constant 0 : i32
    %c0_i32_1 = arith.constant 0 : i32
    return %c0_i32, %c0_i32_0 : i32, i32
  }
  func.func @transform_5(%arg0: i32, %arg1: i32) -> (i32, i32) {
    %c0_i32 = arith.constant 0 : i32
    %c0_i32_0 = arith.constant 0 : i32
    %c0_i32_1 = arith.constant 0 : i32
    return %c0_i32, %c0_i32_0 : i32, i32
  }
  func.func @transform_6(%arg0: i32, %arg1: i32) -> (i32, i32) {
    %c0_i32 = arith.constant 0 : i32
    return %arg0, %arg1 : i32, i32
  }
  func.func @transform_7(%arg0: i32, %arg1: i32) -> (i32, i32) {
    %c0_i32 = arith.constant 0 : i32
    return %arg0, %arg1 : i32, i32
  }
  func.func @transform_8(%arg0: i32, %arg1: i32) -> (i32, i32) {
    %c0_i32 = arith.constant 0 : i32
    return %arg0, %arg1 : i32, i32
  }
}

</mosaic_0001>

<llo_original>
// kernel: tpu_custom_call.1
$region0: #{tpu_custom_call.1}
  #allocation0 [shape = 'u32[]', space=smem, size = 0x4, offset = 0x4, fixed_abs, tag = 'smem constant byte address 0x4 - core index']
  #allocation1 [shape = 'u32[144,128]{1,0:T(1,128)}', space=vmem, size = 0x12000, scoped, tag = 'internal scratch']
  #allocation2 [shape = 'f32[2,32]{1,0:T(2,128)}', space=vmem, size = 0x400, scoped, tag = 'scratch operand']
  #allocation3 [shape = 'f32[2,32]{1,0:T(2,128)}', space=vmem, size = 0x400, scoped, tag = 'scratch operand']
  %s0 = inlined_call_operand.hbm [shape: f32[2,8,32], index: 0, kind: input, shape index: {}]
  %s1 = inlined_call_operand.hbm [shape: f32[2,32], index: 1, kind: input, shape index: {}]
  %s2 = inlined_call_operand.hbm [shape: f32[32,32], index: 2, kind: input, shape index: {}]
  %s3 = inlined_call_operand.vmem [shape: f32[1,32], index: 3, kind: input, shape index: {}]
  %s4 = inlined_call_operand.hbm [shape: f32[32,32], index: 4, kind: input, shape index: {}]
  %s5 = inlined_call_operand.vmem [shape: f32[1,32], index: 5, kind: input, shape index: {}]
  %s6 = inlined_call_operand.vmem [shape: s32[2,8], index: 6, kind: input, shape index: {}]
  %s7 = inlined_call_operand.hbm [shape: f32[2,8], index: 7, kind: output, shape index: {0}]
  %s8 = inlined_call_operand.hbm [shape: f32[2,8], index: 8, kind: output, shape index: {1}]
  %9 = xla_tuple %s7, %s8
  %s10 = sld [smem:[#allocation0]]
  $region66: #{tpu_custom_call.1} parent=0
    _
  %s12 = ssub.s32 1, %s10
  %s13 = scalar_select 0, %s12, %s10
  $region1: #{tpu_custom_call.1} parent=0
    #allocation4 [shape = 'u8[8192]{0}', space=vmem, size = 0x2000, scoped, tag = 'input window, operand 0, single buffered']
    #allocation5 [shape = 's32[1]{0}', space=sflag, size = 0x4, scoped, tag = 'scoped memory for tpu_custom_call.1']
    #allocation6 [shape = 's32[1]{0}', space=sflag, size = 0x4, scoped, tag = 'scoped memory for tpu_custom_call.1']
    #allocation7 [shape = 'u8[1024]{0}', space=vmem, size = 0x400, scoped, tag = 'input window, operand 1, single buffered']
    #allocation8 [shape = 's32[1]{0}', space=sflag, size = 0x4, scoped, tag = 'scoped memory for tpu_custom_call.1']
    #allocation9 [shape = 'u8[16384]{0}', space=vmem, size = 0x4000, scoped, tag = 'input window, operand 2, single buffered']
    #allocation10 [shape = 'u8[16384]{0}', space=vmem, size = 0x4000, scoped, tag = 'input window, operand 4, single buffered']
    #allocation11 [shape = 's32[1]{0}', space=sflag, size = 0x4, scoped, tag = 'scoped memory for tpu_custom_call.1']
    #allocation12 [shape = 'u8[1024]{0}', space=vmem, size = 0x400, scoped, tag = 'output window, operand 0, single buffered']
    #allocation13 [shape = 'u8[1024]{0}', space=vmem, size = 0x400, scoped, tag = 'output window, operand 1, single buffered']
    #allocation14 [shape = 's32[1]{0}', space=sflag, size = 0x4, scoped, tag = 'scoped memory for tpu_custom_call.1']
    %14 = vsyncpa [#allocation5], 0
    %15 = vsyncpa [#allocation8], 0
    %16 = vsyncpa [#allocation11], 0
    %17 = vsyncpa [#allocation6], 0
    %18 = vsyncpa [#allocation14], 0
    // Predicated region
    $region2: #{tpu_custom_call.1} parent=1 // pred_check
      _
    $region3: #{tpu_custom_call.1} parent=1 // pred_check_branch
      %20 = sbr.rel (0) target = $region5
    $region4: #{tpu_custom_call.1} parent=1 // pred_region
      %s22 = ssub.s32 256, 256
      %23 = vsyncadd [#allocation5], %s22
      %s24 = sshll.u32 [#allocation4], 4
      %s25 = int_to_ptr.vmem [resolvable:$true] %s24
      %30 = dma.hbm_to_vmem [thread:$0]  %s0, 256, %s25, [#allocation5], 128, 128, 8
    $region5: #{tpu_custom_call.1} parent=1 // pred_fallthru
      _
    // Predicated region
    $region6: #{tpu_custom_call.1} parent=1 // pred_check
      _
    $region7: #{tpu_custom_call.1} parent=1 // pred_check_branch
      %32 = sbr.rel (0) target = $region9
    $region8: #{tpu_custom_call.1} parent=1 // pred_region
      %s34 = ssub.s32 32, 32
      %35 = vsyncadd [#allocation8], %s34
      %s37 = sshll.u32 [#allocation7], 4
      %s38 = int_to_ptr.vmem [resolvable:$true] %s37
      %40 = dma.hbm_to_vmem [thread:$0]  %s1, 32, %s38, [#allocation8]
    $region9: #{tpu_custom_call.1} parent=1 // pred_fallthru
      _
    // Predicated region
    $region10: #{tpu_custom_call.1} parent=1 // pred_check
      _
    $region11: #{tpu_custom_call.1} parent=1 // pred_check_branch
      %42 = sbr.rel (0) target = $region13
    $region12: #{tpu_custom_call.1} parent=1 // pred_region
      %s44 = ssub.s32 512, 512
      %45 = vsyncadd [#allocation8], %s44
      %s46 = sshll.u32 [#allocation9], 4
      %s47 = int_to_ptr.vmem [resolvable:$true] %s46
      %52 = dma.hbm_to_vmem [thread:$0]  %s2, 512, %s47, [#allocation8], 128, 128, 8
    $region13: #{tpu_custom_call.1} parent=1 // pred_fallthru
      _
    // Predicated region
    $region14: #{tpu_custom_call.1} parent=1 // pred_check
      _
    $region15: #{tpu_custom_call.1} parent=1 // pred_check_branch
      %54 = sbr.rel (0) target = $region17
    $region16: #{tpu_custom_call.1} parent=1 // pred_region
      _
    $region17: #{tpu_custom_call.1} parent=1 // pred_fallthru
      _
    // Predicated region
    $region18: #{tpu_custom_call.1} parent=1 // pred_check
      _
    $region19: #{tpu_custom_call.1} parent=1 // pred_check_branch
      %56 = sbr.rel (0) target = $region21
    $region20: #{tpu_custom_call.1} parent=1 // pred_region
      %s58 = ssub.s32 512, 512
      %59 = vsyncadd [#allocation11], %s58
      %s60 = sshll.u32 [#allocation10], 4
      %s61 = int_to_ptr.vmem [resolvable:$true] %s60
      %66 = dma.hbm_to_vmem [thread:$0]  %s4, 512, %s61, [#allocation11], 128, 128, 8
    $region21: #{tpu_custom_call.1} parent=1 // pred_fallthru
      _
    // Predicated region
    $region22: #{tpu_custom_call.1} parent=1 // pred_check
      _
    $region23: #{tpu_custom_call.1} parent=1 // pred_check_branch
      %68 = sbr.rel (0) target = $region25
    $region24: #{tpu_custom_call.1} parent=1 // pred_region
      _
    $region25: #{tpu_custom_call.1} parent=1 // pred_fallthru
      _
    // Predicated region
    $region26: #{tpu_custom_call.1} parent=1 // pred_check
      _
    $region27: #{tpu_custom_call.1} parent=1 // pred_check_branch
      %70 = sbr.rel (0) target = $region29
    $region28: #{tpu_custom_call.1} parent=1 // pred_region
      _
    $region29: #{tpu_custom_call.1} parent=1 // pred_fallthru
      _
    // Predicated region
    $region30: #{tpu_custom_call.1} parent=1 // pred_check
      _
    $region31: #{tpu_custom_call.1} parent=1 // pred_check_branch
      %72 = sbr.rel (0) target = $region33
    $region32: #{tpu_custom_call.1} parent=1 // pred_region
      %73 = dma.done [#allocation5], 256
    $region33: #{tpu_custom_call.1} parent=1 // pred_fallthru
      _
    // Predicated region
    $region34: #{tpu_custom_call.1} parent=1 // pred_check
      _
    $region35: #{tpu_custom_call.1} parent=1 // pred_check_branch
      %75 = sbr.rel (0) target = $region37
    $region36: #{tpu_custom_call.1} parent=1 // pred_region
      %76 = dma.done [#allocation8], 32
    $region37: #{tpu_custom_call.1} parent=1 // pred_fallthru
      _
    // Predicated region
    $region38: #{tpu_custom_call.1} parent=1 // pred_check
      _
    $region39: #{tpu_custom_call.1} parent=1 // pred_check_branch
      %78 = sbr.rel (0) target = $region41
    $region40: #{tpu_custom_call.1} parent=1 // pred_region
      %79 = dma.done [#allocation8], 512
    $region41: #{tpu_custom_call.1} parent=1 // pred_fallthru
      _
    // Predicated region
    $region42: #{tpu_custom_call.1} parent=1 // pred_check
      _
    $region43: #{tpu_custom_call.1} parent=1 // pred_check_branch
      %81 = sbr.rel (0) target = $region45
    $region44: #{tpu_custom_call.1} parent=1 // pred_region
      %82 = dma.done [#allocation11], 512
    $region45: #{tpu_custom_call.1} parent=1 // pred_fallthru
      _
    %p83 = scmp.eq.s32.totalorder 0, 0
    // Predicated region
    $region46: #{tpu_custom_call.1} parent=1 // pred_check
      %p84 = pneg %p83
    $region47: #{tpu_custom_call.1} parent=1 // pred_check_branch
      %86 = sbr.rel (%p84) target = $region49
    $region48: #{tpu_custom_call.1} parent=1 // pred_region
      %v87 = vld [vmem:[#allocation7] sm:$0x3]
      %v88 = vld [vmem:[#allocation9] sm:$0xff]
      %v89 = vld [vmem:[#allocation9 + $0x8] sm:$0xff]
      %v90 = vld [vmem:[#allocation9 + $0x10] sm:$0xff]
      %v91 = vld [vmem:[#allocation9 + $0x18] sm:$0xff]
      %v92 = vld [vmem:[%s3] sm:$0x1]
      %v94 = vlaneseq
      %v95 = vshrl.u32 %v94, 7
      %v96 = vsub.s32 0, %v95
      %v97 = vrot.slane %v92, %v96
      %vm99 = vcmask 261120
      %v101 = vsel %vm99, %v87, 0
      %103 = vmatprep.subr.mxu0 0.0
      %104 = vmatpush1.msra.mxu0 0.0
      %105 = vmatprep.subr.mxu0 0.0
      %106 = vmatpush1.msra.mxu0 0.0
      %107 = vmatprep.subr.mxu0 0.0
      %108 = vmatpush1.msra.mxu0 0.0
      %109 = vmatprep.subr.mxu0 0.0
      %110 = vmatpush1.msra.mxu0 0.0
      %111 = vmatprep.subr.mxu0 0.0
      %112 = vmatpush1.msra.mxu0 0.0
      %113 = vmatprep.subr.mxu0 0.0
      %114 = vmatpush1.msra.mxu0 0.0
      %115 = vmatprep.subr.mxu0 0.0
      %116 = vmatpush1.msra.mxu0 0.0
      %117 = vmatprep.subr.mxu0 0.0
      %118 = vmatpush1.msra.mxu0 0.0
      %119 = vmatprep.subr.mxu0 0.0
      %120 = vmatpush1.msra.mxu0 0.0
      %121 = vmatprep.subr.mxu0 0.0
      %122 = vmatpush1.msra.mxu0 0.0
      %123 = vmatprep.subr.mxu0 0.0
      %124 = vmatpush1.msra.mxu0 0.0
      %125 = vmatprep.subr.mxu0 0.0
      %126 = vmatpush1.msra.mxu0 0.0
      %127 = vmatprep.subr.mxu0 0.0
      %128 = vmatpush1.msra.mxu0 %v91
      %129 = vmatprep.subr.mxu0 0.0
      %130 = vmatpush1.msra.mxu0 %v90
      %131 = vmatprep.subr.mxu0 0.0
      %132 = vmatpush1.msra.mxu0 %v89
      %133 = vmatprep.subr.mxu0 0.0
      %134 = vmatpush1.msra.mxu0 %v88
      %135 = vmatprep.subr.mxu0 0.0
      %136 = vmatpush2.msra.mxu0 0.0
      %137 = vmatprep.subr.mxu0 0.0
      %138 = vmatpush2.msra.mxu0 0.0
      %139 = vmatprep.subr.mxu0 0.0
      %140 = vmatpush2.msra.mxu0 0.0
      %141 = vmatprep.subr.mxu0 0.0
      %142 = vmatpush2.msra.mxu0 0.0
      %143 = vmatprep.subr.mxu0 0.0
      %144 = vmatpush2.msra.mxu0 0.0
      %145 = vmatprep.subr.mxu0 0.0
      %146 = vmatpush2.msra.mxu0 0.0
      %147 = vmatprep.subr.mxu0 0.0
      %148 = vmatpush2.msra.mxu0 0.0
      %149 = vmatprep.subr.mxu0 0.0
      %150 = vmatpush2.msra.mxu0 0.0
      %151 = vmatprep.subr.mxu0 0.0
      %152 = vmatpush2.msra.mxu0 0.0
      %153 = vmatprep.subr.mxu0 0.0
      %154 = vmatpush2.msra.mxu0 0.0
      %155 = vmatprep.subr.mxu0 0.0
      %156 = vmatpush2.msra.mxu0 0.0
      %157 = vmatprep.subr.mxu0 0.0
      %158 = vmatpush2.msra.mxu0 0.0
      %159 = vmatprep.subr.mxu0 0.0
      %160 = vmatpush2.msra.mxu0 0.0
      %161 = vmatprep.subr.mxu0 0.0
      %162 = vmatpush2.msra.mxu0 0.0
      %163 = vmatprep.subr.mxu0 0.0
      %164 = vmatpush2.msra.mxu0 0.0
      %165 = vmatprep.subr.mxu0 0.0
      %166 = vmatpush2.msra.mxu0 0.0
      %167 = vmatprep.mubr.f32.mxu0 0.0
      %168 = vmatmul.mubr.f32.gmra.mxu0 %v101
      %v169 = vpop.f32.mrf.mxu0
      %v170 = vadd.f32 %v97, %v169
      %v171 = vpop.f32.mrf.mxu0
      %172 = vdwg.mxu0
      %vm173 = vcmask 254976
      %174 = vst.msk [vmem:[#allocation2] sm:$0x3] %vm173, %v170
      %v175 = vld [vmem:[#allocation10] sm:$0xff]
      %v176 = vld [vmem:[#allocation10 + $0x8] sm:$0xff]
      %v177 = vld [vmem:[#allocation10 + $0x10] sm:$0xff]
      %v178 = vld [vmem:[#allocation10 + $0x18] sm:$0xff]
      %v179 = vld [vmem:[%s5] sm:$0x1]
      %v181 = vlaneseq
      %v182 = vshrl.u32 %v181, 7
      %v183 = vsub.s32 0, %v182
      %v184 = vrot.slane %v179, %v183
      %186 = vmatprep.subr.mxu0 0.0
      %187 = vmatpush1.msra.mxu0 0.0
      %188 = vmatprep.subr.mxu0 0.0
      %189 = vmatpush1.msra.mxu0 0.0
      %190 = vmatprep.subr.mxu0 0.0
      %191 = vmatpush1.msra.mxu0 0.0
      %192 = vmatprep.subr.mxu0 0.0
      %193 = vmatpush1.msra.mxu0 0.0
      %194 = vmatprep.subr.mxu0 0.0
      %195 = vmatpush1.msra.mxu0 0.0
      %196 = vmatprep.subr.mxu0 0.0
      %197 = vmatpush1.msra.mxu0 0.0
      %198 = vmatprep.subr.mxu0 0.0
      %199 = vmatpush1.msra.mxu0 0.0
      %200 = vmatprep.subr.mxu0 0.0
      %201 = vmatpush1.msra.mxu0 0.0
      %202 = vmatprep.subr.mxu0 0.0
      %203 = vmatpush1.msra.mxu0 0.0
      %204 = vmatprep.subr.mxu0 0.0
      %205 = vmatpush1.msra.mxu0 0.0
      %206 = vmatprep.subr.mxu0 0.0
      %207 = vmatpush1.msra.mxu0 0.0
      %208 = vmatprep.subr.mxu0 0.0
      %209 = vmatpush1.msra.mxu0 0.0
      %210 = vmatprep.subr.mxu0 0.0
      %211 = vmatpush1.msra.mxu0 %v178
      %212 = vmatprep.subr.mxu0 0.0
      %213 = vmatpush1.msra.mxu0 %v177
      %214 = vmatprep.subr.mxu0 0.0
      %215 = vmatpush1.msra.mxu0 %v176
      %216 = vmatprep.subr.mxu0 0.0
      %217 = vmatpush1.msra.mxu0 %v175
      %218 = vmatprep.subr.mxu0 0.0
      %219 = vmatpush2.msra.mxu0 0.0
      %220 = vmatprep.subr.mxu0 0.0
      %221 = vmatpush2.msra.mxu0 0.0
      %222 = vmatprep.subr.mxu0 0.0
      %223 = vmatpush2.msra.mxu0 0.0
      %224 = vmatprep.subr.mxu0 0.0
      %225 = vmatpush2.msra.mxu0 0.0
      %226 = vmatprep.subr.mxu0 0.0
      %227 = vmatpush2.msra.mxu0 0.0
      %228 = vmatprep.subr.mxu0 0.0
      %229 = vmatpush2.msra.mxu0 0.0
      %230 = vmatprep.subr.mxu0 0.0
      %231 = vmatpush2.msra.mxu0 0.0
      %232 = vmatprep.subr.mxu0 0.0
      %233 = vmatpush2.msra.mxu0 0.0
      %234 = vmatprep.subr.mxu0 0.0
      %235 = vmatpush2.msra.mxu0 0.0
      %236 = vmatprep.subr.mxu0 0.0
      %237 = vmatpush2.msra.mxu0 0.0
      %238 = vmatprep.subr.mxu0 0.0
      %239 = vmatpush2.msra.mxu0 0.0
      %240 = vmatprep.subr.mxu0 0.0
      %241 = vmatpush2.msra.mxu0 0.0
      %242 = vmatprep.subr.mxu0 0.0
      %243 = vmatpush2.msra.mxu0 0.0
      %244 = vmatprep.subr.mxu0 0.0
      %245 = vmatpush2.msra.mxu0 0.0
      %246 = vmatprep.subr.mxu0 0.0
      %247 = vmatpush2.msra.mxu0 0.0
      %248 = vmatprep.subr.mxu0 0.0
      %249 = vmatpush2.msra.mxu0 0.0
      %250 = vmatprep.mubr.f32.mxu0 0.0
      %251 = vmatmul.mubr.f32.gmra.mxu0 %v101
      %v252 = vpop.f32.mrf.mxu0
      %v253 = vadd.f32 %v184, %v252
      %v254 = vpop.f32.mrf.mxu0
      %255 = vdwg.mxu0
      %256 = vst.msk [vmem:[#allocation3] sm:$0x3] %vm173, %v253
    $region49: #{tpu_custom_call.1} parent=1 // pred_fallthru
      _
    %v257 = vld [vmem:[#allocation4] sm:$0xff]
    %v258 = vld [vmem:[#allocation4 + $0x8] sm:$0xff]
    %v259 = vld [vmem:[%s6] sm:$0x3]
    %vm260 = vcmp.ne.s32.totalorder %v259, 0
    %v261 = vld [vmem:[#allocation2] sm:$0x3]
    %v264 = vunpack.c.l.s4 1966171168
    %v265 = vunpack.c.0.s8 %v264
    %v266 = vlaneseq
    %v267 = vshrl.u32 %v266, 7
    %v268 = vsub.s32 %v265, %v267
    %v269 = vrot.slane %v261, %v268
    %v270 = vcombine.high %v269, %v269
    %v272 = vunpack.c.l.s4 1966171168
    %v273 = vunpack.c.0.s8 %v272
    %v274 = vlaneseq
    %v275 = vshrl.u32 %v274, 7
    %v276 = vsub.s32 %v273, %v275
    %v277 = vrot.slane %v269, %v276
    %v279 = vunpack.c.l.s4 1966171168
    %v280 = vunpack.c.0.s8 %v279
    %v281 = vlaneseq
    %v282 = vshrl.u32 %v281, 7
    %v283 = vsub.s32 %v280, %v282
    %v284 = vrot.slane %v270, %v283
    %v285 = vlaneseq
    %v286 = vshrl.u32 %v285, 7
    %v287 = vsub.s32 0, %v286
    %v288 = vrot.slane %v277, %v287
    %v289 = vlaneseq
    %v290 = vshrl.u32 %v289, 7
    %v291 = vsub.s32 0, %v290
    %v292 = vrot.slane %v284, %v291
    %v295 = vmul.f32 %v257, %v288
    %v296 = vmul.f32 %v258, %v292
    %vm297 = vcmask 261120
    %v298 = vsel %vm297, %v295, 0.0
    %299 = vadd.xlane.f32.xlu0 %v298
    %v300 = vpop.xlane.xlu0 %299
    %v301 = vsel %vm297, %v296, 0.0
    %302 = vadd.xlane.f32.xlu0 %v301
    %v303 = vpop.xlane.xlu0 %302
    %v304 = vld [vmem:[#allocation3] sm:$0x3]
    %v307 = vunpack.c.l.s4 1966171168
    %v308 = vunpack.c.0.s8 %v307
    %v309 = vlaneseq
    %v310 = vshrl.u32 %v309, 7
    %v311 = vsub.s32 %v308, %v310
    %v312 = vrot.slane %v304, %v311
    %v313 = vcombine.high %v312, %v312
    %v315 = vunpack.c.l.s4 1966171168
    %v316 = vunpack.c.0.s8 %v315
    %v317 = vlaneseq
    %v318 = vshrl.u32 %v317, 7
    %v319 = vsub.s32 %v316, %v318
    %v320 = vrot.slane %v312, %v319
    %v322 = vunpack.c.l.s4 1966171168
    %v323 = vunpack.c.0.s8 %v322
    %v324 = vlaneseq
    %v325 = vshrl.u32 %v324, 7
    %v326 = vsub.s32 %v323, %v325
    %v327 = vrot.slane %v313, %v326
    %v328 = vlaneseq
    %v329 = vshrl.u32 %v328, 7
    %v330 = vsub.s32 0, %v329
    %v331 = vrot.slane %v320, %v330
    %v332 = vlaneseq
    %v333 = vshrl.u32 %v332, 7
    %v334 = vsub.s32 0, %v333
    %v335 = vrot.slane %v327, %v334
    %v338 = vmul.f32 %v257, %v331
    %v339 = vmul.f32 %v258, %v335
    %v340 = vsel %vm297, %v338, 0.0
    %341 = vadd.xlane.f32.xlu0 %v340
    %v342 = vpop.xlane.xlu0 %341
    %v343 = vsel %vm297, %v339, 0.0
    %344 = vadd.xlane.f32.xlu0 %v343
    %v345 = vpop.xlane.xlu0 %344
    %v348 = vlaneseq
    %v349 = vand.u32 %v348, 127
    %v350 = vlaneseq
    %v351 = vshrl.u32 %v350, 7
    %v352 = vsub.s32 %v349, %v351
    %v353 = vrot.slane %v300, %v352
    %v354 = vlaneseq
    %v355 = vshrl.u32 %v354, 7
    %v356 = vsub.s32 %v349, %v355
    %v357 = vrot.slane %v303, %v356
    %vm358 = vcmask 1041409
    %v359 = vsel %vm358, %v357, %v353
    %v361 = vsel %vm260, -inf, %v359
    %vm362 = vcmask 58368
    %363 = vst.msk [vmem:[#allocation12] sm:$0x3] %vm362, %v361
    %v366 = vlaneseq
    %v367 = vshrl.u32 %v366, 7
    %v368 = vsub.s32 %v349, %v367
    %v369 = vrot.slane %v342, %v368
    %v370 = vlaneseq
    %v371 = vshrl.u32 %v370, 7
    %v372 = vsub.s32 %v349, %v371
    %v373 = vrot.slane %v345, %v372
    %v374 = vsel %vm358, %v373, %v369
    %v376 = vsel %vm260, -inf, %v374
    %377 = vst.msk [vmem:[#allocation13] sm:$0x3] %vm362, %v376
    // Predicated region
    $region50: #{tpu_custom_call.1} parent=1 // pred_check
      _
    $region51: #{tpu_custom_call.1} parent=1 // pred_check_branch
      %379 = sbr.rel (0) target = $region53
    $region52: #{tpu_custom_call.1} parent=1 // pred_region
      %s381 = ssub.s32 32, 32
      %382 = vsyncadd [#allocation6], %s381
      %s384 = sshll.u32 [#allocation12], 4
      %s385 = int_to_ptr.vmem [resolvable:$true] %s384
      %387 = dma.vmem_to_hbm [thread:$0]  %s385, 32, %s7, [#allocation6]
    $region53: #{tpu_custom_call.1} parent=1 // pred_fallthru
      _
    // Predicated region
    $region54: #{tpu_custom_call.1} parent=1 // pred_check
      _
    $region55: #{tpu_custom_call.1} parent=1 // pred_check_branch
      %389 = sbr.rel (0) target = $region57
    $region56: #{tpu_custom_call.1} parent=1 // pred_region
      %s391 = ssub.s32 32, 32
      %392 = vsyncadd [#allocation14], %s391
      %s394 = sshll.u32 [#allocation13], 4
      %s395 = int_to_ptr.vmem [resolvable:$true] %s394
      %397 = dma.vmem_to_hbm [thread:$0]  %s395, 32, %s8, [#allocation14]
    $region57: #{tpu_custom_call.1} parent=1 // pred_fallthru
      _
    // Predicated region
    $region58: #{tpu_custom_call.1} parent=1 // pred_check
      _
    $region59: #{tpu_custom_call.1} parent=1 // pred_check_branch
      %399 = sbr.rel (0) target = $region61
    $region60: #{tpu_custom_call.1} parent=1 // pred_region
      %400 = dma.done [#allocation6], 32
    $region61: #{tpu_custom_call.1} parent=1 // pred_fallthru
      _
    // Predicated region
    $region62: #{tpu_custom_call.1} parent=1 // pred_check
      _
    $region63: #{tpu_custom_call.1} parent=1 // pred_check_branch
      %402 = sbr.rel (0) target = $region65
    $region64: #{tpu_custom_call.1} parent=1 // pred_region
      %403 = dma.done [#allocation14], 32
    $region65: #{tpu_custom_call.1} parent=1 // pred_fallthru
      _
    %404 = vsyncpa [#allocation5], 1
    %405 = vsyncpa [#allocation8], 1
    %406 = vsyncpa [#allocation11], 1
    %407 = vsyncpa [#allocation6], 1
    %408 = vsyncpa [#allocation14], 1

</llo_original>
